<compile_context>
chip_gen: v7x
topology: tpu7x:2x2x1
jax: 0.10.0
libtpu: 0.0.40
codegen_flags: <defaults>
</compile_context>

<pallas_src>
import functools
import re

import jax
import jax.numpy as jnp
from jax.experimental import pallas as pl
from jax.experimental.pallas import tpu as pltpu


_LANES = 128
_ELEMENTWISE_MAPPINGS = ("abs", "exp", "square", "softplus", "celu")
_TRANSCENDENTAL_MAPPINGS = ("exp", "softplus", "celu")
_SMALL_BYPASS_ELEMS = 64 * 1024          # below this, plain XLA is faster


# --------------------------- generation detection ---------------------------

@functools.lru_cache(maxsize=None)
def _tpu_generation() -> int:
    """Best-effort TPU generation number (5, 6, 7, ...) from device_kind."""
    try:
        kind = jax.devices()[0].device_kind.lower()
    except Exception:
        return 6
    m = re.search(r"(\d+)", kind)
    if m:
        return int(m.group(1))
    return 6


def _is_dual_tensorcore(gen: int) -> bool:
    return gen >= 7


def _block_bytes(gen: int) -> int:
    # v7x: bigger tiles to amortize per-step overhead against 3.2 TB/s HBM.
    # v5e/v6e: 2 MiB is already at the ~85-86% roofline plateau.
    return (8 << 20) if gen >= 7 else (2 << 20)


def _vmem_limit_bytes(gen: int) -> int:
    # v7x: 8 MiB tiles x 2 bufs x (in+out) = 32 MiB working set -> 40 MiB cap.
    # v5e/v6e: explicit 32 MiB (above v5e's 16 MiB scoped default).
    return (40 << 20) if gen >= 7 else (32 << 20)


def _needs_f32_transcendentals(gen: int) -> bool:
    # Only v5e lacks bf16 VPU/EUP; v6e/v7x compute bf16 natively.
    return gen < 6


# ----------------------------- math (shared) -------------------------------

def _positive_math(x, mapping: str):
    if mapping == "abs":
        return jnp.abs(x)
    if mapping == "exp":
        return jnp.exp(x)
    if mapping == "square":
        return x * x
    if mapping == "softplus":
        # Numerically-stable softplus (matches F.softplus beta=1; the
        # threshold=20 shortcut is numerically equivalent for large x).
        return jnp.maximum(x, 0.0) + jnp.log1p(jnp.exp(-jnp.abs(x)))
    if mapping == "celu":
        # 1 + celu(x), alpha=1:  x > 0 -> 1 + x ;  x <= 0 -> exp(x)
        # (exp(x) in the discarded branch may overflow for large x; harmless,
        #  jnp.where selects 1 + x there.)
        return jnp.where(x > 0.0, 1.0 + x, jnp.exp(x))
    raise ValueError(f"unsupported mapping: {mapping}")


# ----------------------------- Pallas kernel -------------------------------

def _positive_kernel(x_ref, o_ref, *, mapping: str, compute_f32: bool):
    x = x_ref[...]
    if compute_f32 and x.dtype != jnp.float32:
        # f32 compute only on v5e (no bf16 VPU/EUP there).
        x = x.astype(jnp.float32)
    y = _positive_math(x, mapping)
    o_ref[...] = y.astype(o_ref.dtype)


# ------------------------------- wrapper ------------------------------------

def _sublane_multiple(dtype) -> int:
    # 32-bit -> 8, 16-bit -> 16, 8-bit -> 32 (packed dtypes tile deeper).
    return max(8, 32 // jnp.dtype(dtype).itemsize)


@functools.partial(jax.jit, static_argnames=("mapping", "force_pallas"))
def positive_forward(x: jnp.ndarray, mapping: str,
                     force_pallas: bool = False) -> jnp.ndarray:
    """Pallas implementation of Positive(mapping).forward(x)."""
    if mapping == "cholesky":
        # TODO(synk): torch.cholesky is a matrix factorization with sequential
        # data dependence; no clean single-pass Pallas TPU kernel — fall back.
        return jnp.linalg.cholesky(x)
    assert mapping in _ELEMENTWISE_MAPPINGS

    n = x.size
    dtype = x.dtype
    if n == 0 or (not force_pallas and n < _SMALL_BYPASS_ELEMS):
        # Launch overhead dominates for tiny tensors.
        return _positive_math(x, mapping).astype(dtype)

    gen = _tpu_generation()
    dual_tc = _is_dual_tensorcore(gen)
    itemsize = jnp.dtype(dtype).itemsize
    sub = _sublane_multiple(dtype)

    # Lane-dense slab: rows of 128 lanes.  NOT rounded up to the block — the
    # ragged last block is masked by Pallas.
    rows = pl.cdiv(n, _LANES)

    # Byte-budgeted block (generation-keyed), sublane-aligned, never larger
    # than the (sublane-rounded) whole slab.
    max_block_rows = max(sub, (_block_bytes(gen) // (_LANES * itemsize)) // sub * sub)
    max_block_rows = min(max_block_rows, pl.cdiv(rows, sub) * sub)

    grid_n = pl.cdiv(rows, max_block_rows)
    if dual_tc and grid_n % 2 == 1:
        # v7x: prefer an even number of grid steps so the "parallel" axis
        # splits into balanced halves across the two TensorCores.
        cand = pl.cdiv(pl.cdiv(rows, grid_n + 1), sub) * sub
        if pl.cdiv(rows, cand) % 2 == 0:
            block_rows = cand
        else:
            block_rows = pl.cdiv(pl.cdiv(rows, grid_n), sub) * sub
    else:
        block_rows = pl.cdiv(pl.cdiv(rows, grid_n), sub) * sub
    block_rows = max(sub, block_rows)
    grid_n = pl.cdiv(rows, block_rows)

    # Pad only to the 128-lane boundary (makes the reshape free); common
    # n % 128 == 0 case skips pad and slice entirely (no extra HBM passes).
    slab_elems = rows * _LANES
    flat = x.reshape(-1)
    if slab_elems != n:
        flat = jnp.pad(flat, (0, slab_elems - n))
    x2d = flat.reshape(rows, _LANES)

    compute_f32 = (mapping in _TRANSCENDENTAL_MAPPINGS
                   and dtype != jnp.float32
                   and _needs_f32_transcendentals(gen))

    out2d = pl.pallas_call(
        functools.partial(_positive_kernel, mapping=mapping,
                          compute_f32=compute_f32),
        out_shape=jax.ShapeDtypeStruct((rows, _LANES), dtype),
        grid_spec=pltpu.PrefetchScalarGridSpec(
            num_scalar_prefetch=0,
            grid=(grid_n,),
            in_specs=[pl.BlockSpec((block_rows, _LANES), lambda i: (i, 0))],
            out_specs=pl.BlockSpec((block_rows, _LANES), lambda i: (i, 0)),
        ),
        compiler_params=pltpu.CompilerParams(
            dimension_semantics=("parallel",),
            vmem_limit_bytes=_vmem_limit_bytes(gen),
        ),
    )(x2d)

    out_flat = out2d.reshape(-1)
    if slab_elems != n:
        out_flat = out_flat[:n]
    return out_flat.reshape(x.shape)


# ------------------------------ reference -----------------------------------

def _reference(x, mapping):
    if mapping == "abs":
        return jnp.abs(x)
    if mapping == "exp":
        return jnp.exp(x)
    if mapping == "square":
        return jnp.square(x)
    if mapping == "softplus":
        return jax.nn.softplus(x)
    if mapping == "celu":
        return 1.0 + jax.nn.celu(x)
    raise ValueError(mapping)


# --------------------------------- main --------------------------------------

if __name__ == "__main__":
    key = jax.random.PRNGKey(0)
    k1, k2, k3, k4 = jax.random.split(key, 4)

    # Small NCHW input (module-consistent shape): forced through the Pallas
    # kernel to validate it, and also via the default (bypass) path.
    x_small = jax.random.normal(k1, (2, 4, 16, 16), dtype=jnp.float32)
    # Larger input: exercises the real multi-MiB-block Pallas path (aligned,
    # so it also exercises the no-pad / no-slice fast path).
    x_big = jax.random.normal(k2, (8, 16, 64, 64), dtype=jnp.float32)
    # Unaligned element count: exercises lane-padding + ragged last block.
    x_odd = jax.random.normal(k3, (3, 5, 17, 19), dtype=jnp.float32)

    for mapping in _ELEMENTWISE_MAPPINGS:
        for x in (x_small, x_odd):
            out = positive_forward(x, mapping, force_pallas=True)
            jax.block_until_ready(out)
            ref = _reference(x, mapping)
            assert out.shape == x.shape and out.dtype == x.dtype
            assert jnp.allclose(out, ref, atol=1e-5, rtol=1e-5), mapping

        # default path: bypass for small, Pallas for big
        out_s = positive_forward(x_small, mapping)
        out_b = positive_forward(x_big, mapping)
        jax.block_until_ready((out_s, out_b))
        assert jnp.allclose(out_s, _reference(x_small, mapping), atol=1e-5, rtol=1e-5)
        assert jnp.allclose(out_b, _reference(x_big, mapping), atol=1e-5, rtol=1e-5)

    # bf16 input through the kernel (dtype-aware sublane tiling; native bf16
    # transcendentals on v6e/v7x, f32 upcast only on v5e).
    x_bf16 = jax.random.normal(k4, (4, 8, 32, 32), dtype=jnp.bfloat16)
    out_bf16 = positive_forward(x_bf16, "softplus", force_pallas=True)
    jax.block_until_ready(out_bf16)
    ref_bf16 = jax.nn.softplus(x_bf16.astype(jnp.float32)).astype(jnp.bfloat16)
    assert out_bf16.dtype == jnp.bfloat16
    assert jnp.allclose(out_bf16.astype(jnp.float32),
                        ref_bf16.astype(jnp.float32), atol=2e-2, rtol=2e-2)

    # cholesky mapping (XLA fallback): L @ L.T should reconstruct the input.
    a = jax.random.normal(k4, (8, 8), dtype=jnp.float32)
    spd = a @ a.T + 8.0 * jnp.eye(8, dtype=jnp.float32)
    chol = positive_forward(spd, "cholesky")
    jax.block_until_ready(chol)
    assert jnp.allclose(chol @ chol.T, spd, atol=1e-3, rtol=1e-3)

    print("KERNEL_OK")
</pallas_src>

<mosaic_0001>
module attributes {stable_mosaic.version = 11 : i64} {
  func.func @_positive_kernel(%arg0: i32, %arg1: memref<16x128xf32, #tpu.memory_space<vmem>>, %arg2: memref<16x128xf32, #tpu.memory_space<vmem>>) attributes {dimension_semantics = [#tpu.dimension_semantics<parallel>], iteration_bounds = array<i64: 1>, scalar_prefetch = 0 : i64, scratch_operands = 0 : i64, tpu.core_type = #tpu.core_type<tc>, window_params = [{transform_indices = @transform_0, window_bounds = array<i64: 16, 128>}, {transform_indices = @transform_1, window_bounds = array<i64: 16, 128>}]} {
    %c0 = arith.constant 0 : index
    %c0_0 = arith.constant 0 : index
    %0 = vector.load %arg1[%c0, %c0_0] : memref<16x128xf32, #tpu.memory_space<vmem>>, vector<16x128xf32>
    %1 = math.absf %0 : vector<16x128xf32>
    %c0_1 = arith.constant 0 : index
    %c0_2 = arith.constant 0 : index
    %2 = vector.load %arg2[%c0_1, %c0_2] : memref<16x128xf32, #tpu.memory_space<vmem>>, vector<16x128xf32>
    tpu.vector_store %arg2[%c0_1, %c0_2], %1 {strides = array<i32>} : memref<16x128xf32, #tpu.memory_space<vmem>>, vector<16x128xf32>,
    return
  }
  func.func @transform_0(%arg0: i32) -> (i32, i32) {
    %c0_i32 = arith.constant 0 : i32
    %c0_i32_0 = arith.constant 0 : i32
    return %arg0, %c0_i32 : i32, i32
  }
  func.func @transform_1(%arg0: i32) -> (i32, i32) {
    %c0_i32 = arith.constant 0 : i32
    %c0_i32_0 = arith.constant 0 : i32
    return %arg0, %c0_i32 : i32, i32
  }
}

</mosaic_0001>

<llo_original>
// kernel: positive_forward.1
$region0: #{positive_forward.1}
  #allocation0 [shape = 'u32[]', space=smem, size = 0x4, offset = 0x4, fixed_abs, tag = 'smem constant byte address 0x4 - core index']
  #allocation1 [shape = 'u32[144,128]{1,0:T(1,128)}', space=vmem, size = 0x12000, scoped, tag = 'internal scratch']
  %s0 = inlined_call_operand.vmem [shape: f32[16,128], index: 0, kind: input, shape index: {}]
  %s1 = inlined_call_operand.vmem [shape: f32[16,128], index: 1, kind: output, shape index: {}]
  %s2 = sld [smem:[#allocation0]]
  $region14: #{positive_forward.1} parent=0
    _
  %s4 = ssub.s32 1, %s2
  %s5 = scalar_select 0, %s4, %s2
  // Predicated region
  $region2: #{positive_forward.1} parent=0 // pred_check
    _
  $region3: #{positive_forward.1} parent=0 // pred_check_branch
    %7 = sbr.rel (0) target = $region5
  $region4: #{positive_forward.1} parent=0 // pred_region
    _
  $region5: #{positive_forward.1} parent=0 // pred_fallthru
    _
  %v8 = vld [vmem:[%s0] sm:$0xff]
  %v9 = vld [vmem:[%s0 + $0x8] sm:$0xff]
  %v10 = vand.u32 2147483647, %v8
  %v11 = vand.u32 2147483647, %v9
  %12 = vst [vmem:[%s1] sm:$0xff] %v10
  %13 = vst [vmem:[%s1 + $0x8] sm:$0xff] %v11
  // Predicated region
  $region6: #{positive_forward.1} parent=0 // pred_check
    _
  $region7: #{positive_forward.1} parent=0 // pred_check_branch
    %15 = sbr.rel (0) target = $region9
  $region8: #{positive_forward.1} parent=0 // pred_region
    _
  $region9: #{positive_forward.1} parent=0 // pred_fallthru
    _
  // Predicated region
  $region10: #{positive_forward.1} parent=0 // pred_check
    _
  $region11: #{positive_forward.1} parent=0 // pred_check_branch
    %17 = sbr.rel (0) target = $region13
  $region12: #{positive_forward.1} parent=0 // pred_region
    _
  $region13: #{positive_forward.1} parent=0 // pred_fallthru
    _

</llo_original>
